<compile_context>
chip_gen: v5e
topology: v5e:2x2
jax: 0.10.0
libtpu: 0.0.40
codegen_flags: <defaults>
</compile_context>

<pallas_src>
import enum
from functools import partial

import jax
import jax.numpy as jnp
from jax.experimental import pallas as pl
from jax.experimental.pallas import tpu as pltpu


class ExperimentType(enum.Enum):
    bc = "bc"    # binary classification -> BCEWithLogitsLoss
    mcc = "mcc"  # multi-class classification -> CrossEntropyLoss
    reg = "reg"  # regression -> L1Loss


_LANES = 128
_SUBLANES = 8

# Elementwise path: (4096, 128) f32 block = 2 MiB; 4 input streams x 2
# pipeline buffers = 16 MiB double-buffered footprint (fits v7x's 64 MiB
# physical VMEM with headroom, and v5e/v6e easily).
_ELEM_TILE_ROWS = 4096

# CE path: VMEM budget for the 3 double-buffered logit blocks.
_CE_LOGITS_VMEM_BUDGET = 24 * 1024 * 1024
_CE_MAX_TILE_ROWS = 4096

# Raise scoped VMEM above the 16/32 MiB defaults, stay under v7x's 64 MiB.
_VMEM_LIMIT_BYTES = 48 * 1024 * 1024


def _cdiv(a: int, b: int) -> int:
    return -(-a // b)


# ----------------------------- loss elem fns --------------------------------

def _bce_elem(x, y):
    # numerically stable BCEWithLogits: max(x,0) - x*y + log1p(exp(-|x|))
    # TODO(synk): on v7x the 2 EUP transcendentals/elem/branch can become the
    # binding unit; a bf16 softplus would keep the bc path HBM-bound there.
    return jnp.maximum(x, 0.0) - x * y + jnp.log1p(jnp.exp(-jnp.abs(x)))


def _l1_elem(x, y):
    return jnp.abs(x - y)


# ----------------------------- Pallas kernels -------------------------------

def _fused_elementwise_sum_kernel(elem_fn, tiles_per_core, inv_count,
                                  mask_rows, mask_elems,
                                  a_ref, b_ref, c_ref, y_ref, o_ref, acc_ref):
    """Per-lane partial sums of the 3-branch elementwise loss, tiled over rows.

    acc_ref is a VMEM (8, 128) f32 vector accumulator (VPU adds only); the
    mean divide is folded into the final emit.  Padded / out-of-bounds
    elements are masked against the static true element/row count.
    """
    p = pl.program_id(0)          # core-parallel chunk
    t = pl.program_id(1)          # row tile within the chunk

    @pl.when(t == 0)
    def _():
        acc_ref[...] = jnp.zeros_like(acc_ref)

    tr = a_ref.shape[0]
    y = y_ref[...].astype(jnp.float32)
    loss = (elem_fn(a_ref[...].astype(jnp.float32), y)
            + elem_fn(b_ref[...].astype(jnp.float32), y)
            + elem_fn(c_ref[...].astype(jnp.float32), y))

    if (mask_rows is not None) or (mask_elems is not None):
        row0 = (p * tiles_per_core + t) * tr
        row = row0 + jax.lax.broadcasted_iota(jnp.int32, (tr, _LANES), 0)
        if mask_elems is not None:
            lane = jax.lax.broadcasted_iota(jnp.int32, (tr, _LANES), 1)
            keep = (row * _LANES + lane) < mask_elems
        else:
            keep = row < mask_rows
        loss = jnp.where(keep, loss, 0.0)

    if tr % _SUBLANES == 0:
        # Fold the tile into the (8,128) accumulator: pure vreg-by-vreg adds.
        fold = loss.reshape(tr // _SUBLANES, _SUBLANES, _LANES).sum(axis=0)
    else:
        # Small single-block case (tile == full array, < 8 rows or ragged rows).
        sub = jax.lax.broadcasted_iota(jnp.int32, (_SUBLANES, _LANES), 0)
        fold = jnp.where(sub == 0, jnp.sum(loss, axis=0, keepdims=True), 0.0)
    acc_ref[...] += fold

    @pl.when(t == pl.num_programs(1) - 1)
    def _():
        # Fold the mean divide (static 1/count) into the emit.
        o_ref[...] = acc_ref[...] * inv_count


def _fused_ce_sum_kernel(inv_n, row_limit,
                         a_ref, b_ref, c_ref, lbl_ref, o_ref, acc_ref):
    """Sum over rows of (logsumexp(x) - x[label]) for all 3 branches.

    The per-step scalar add is negligible next to the class-dim reductions,
    so a single SMEM scalar accumulator is kept here.
    """
    t = pl.program_id(0)

    @pl.when(t == 0)
    def _():
        acc_ref[0, 0] = jnp.float32(0.0)

    n, c = a_ref.shape
    lbl = lbl_ref[...]                                       # (TR, 1) int32
    cls = jax.lax.broadcasted_iota(jnp.int32, (n, c), 1)
    sel = (cls == lbl)                                        # boolean one-hot

    if row_limit is not None:
        row = t * n + jax.lax.broadcasted_iota(jnp.int32, (n, 1), 0)
        valid = row < row_limit                               # (TR, 1)
    else:
        valid = None

    part = jnp.float32(0.0)
    for ref in (a_ref, b_ref, c_ref):                         # unrolled
        x = ref[...].astype(jnp.float32)
        m = jnp.max(x, axis=-1, keepdims=True)
        lse = m + jnp.log(jnp.sum(jnp.exp(x - m), axis=-1, keepdims=True))
        picked = jnp.sum(jnp.where(sel, x, 0.0), axis=-1, keepdims=True)
        rl = lse - picked
        if valid is not None:
            rl = jnp.where(valid, rl, 0.0)
        part = part + jnp.sum(rl)
    acc_ref[0, 0] = acc_ref[0, 0] + part

    @pl.when(t == pl.num_programs(0) - 1)
    def _():
        o_ref[0, 0] = acc_ref[0, 0] * inv_n                   # fold the mean


# ------------------------- pallas_call wrappers ------------------------------

def _fused_elementwise_call(elem_fn, a, b, c, y):
    """sum over 3 branches of mean(elem loss) — already normalized."""
    total = a.size

    if total % _LANES == 0:
        rows = total // _LANES
        mask_elems = None

        def prep(arr):
            return arr.reshape(rows, _LANES)      # free reshape, no HBM copy
    else:
        # Ragged tail: one small pad copy is unavoidable to get a 2-D layout.
        # TODO(synk): could be removed with allow_input_fusion / a 1-D spec.
        rows = _cdiv(total, _LANES)
        padded = rows * _LANES
        mask_elems = total

        def prep(arr):
            flat = arr.reshape(-1)
            return jnp.pad(flat, (0, padded - total)).reshape(rows, _LANES)

    tile = rows if rows <= _ELEM_TILE_ROWS else _ELEM_TILE_ROWS
    n_tiles = _cdiv(rows, tile)

    # 2-way split of the row tiles so v7x's two TensorCores both reduce.
    n_par = 2 if (n_tiles >= 2 and n_tiles % 2 == 0) else 1
    tiles_per_core = n_tiles // n_par

    mask_rows = None
    if mask_elems is None and n_tiles * tile != rows:
        mask_rows = rows                           # partial last tile only

    a2, b2, c2, y2 = prep(a), prep(b), prep(c), prep(y)

    in_spec = pl.BlockSpec((tile, _LANES),
                           lambda p, t: (p * tiles_per_core + t, 0))
    out = pl.pallas_call(
        partial(_fused_elementwise_sum_kernel, elem_fn, tiles_per_core,
                1.0 / float(total), mask_rows, mask_elems),
        out_shape=jax.ShapeDtypeStruct((n_par * _SUBLANES, _LANES),
                                       jnp.float32),
        grid=(n_par, tiles_per_core),
        in_specs=[in_spec, in_spec, in_spec, in_spec],
        out_specs=pl.BlockSpec((_SUBLANES, _LANES), lambda p, t: (p, 0)),
        scratch_shapes=[pltpu.VMEM((_SUBLANES, _LANES), jnp.float32)],
        compiler_params=pltpu.CompilerParams(
            dimension_semantics=("parallel", "arbitrary"),
            vmem_limit_bytes=_VMEM_LIMIT_BYTES),
    )(a2, b2, c2, y2)
    # Tiny final cross-lane reduce over (n_par*8, 128) partials (already /N).
    return jnp.sum(out)


def _ce_tile_rows(n: int, cdim: int) -> int:
    """VMEM-budgeted row tile for the CE path."""
    per_row_bytes = 3 * 2 * 4 * cdim          # 3 logit streams, 2 buffers, f32
    t = max(_SUBLANES,
            (_CE_LOGITS_VMEM_BUDGET // per_row_bytes) // _SUBLANES * _SUBLANES)
    t = min(t, _CE_MAX_TILE_ROWS)
    if n <= t:
        return n                                # single full-array block
    return t
    # TODO(synk): for class counts so large that even an 8-row block blows the
    # budget, a class-dim grid axis with an online logsumexp would be needed.


def _fused_ce_call(a, b, c, labels):
    """sum over 3 branches of mean per-row cross-entropy — already normalized."""
    n, cdim = a.shape
    tile = _ce_tile_rows(n, cdim)
    n_tiles = _cdiv(n, tile)
    row_limit = n if n_tiles * tile != n else None

    lbl = labels.reshape(n, 1).astype(jnp.int32)    # free reshape, no pad copy

    # TODO(synk): for small class counts a lane-dense (classes-on-sublanes)
    # layout would use the vregs ~8x better, but only if the producer supplies
    # transposed logits without an extra HBM copy.
    logit_spec = pl.BlockSpec((tile, cdim), lambda i: (i, 0))
    lbl_spec = pl.BlockSpec((tile, 1), lambda i: (i, 0))
    out = pl.pallas_call(
        partial(_fused_ce_sum_kernel, 1.0 / float(n), row_limit),
        out_shape=jax.ShapeDtypeStruct((1, 1), jnp.float32),
        grid=(n_tiles,),
        in_specs=[logit_spec, logit_spec, logit_spec, lbl_spec],
        out_specs=pl.BlockSpec(memory_space=pltpu.MemorySpace.SMEM),
        scratch_shapes=[pltpu.SMEM((1, 1), jnp.float32)],
        compiler_params=pltpu.CompilerParams(
            dimension_semantics=("arbitrary",),
            vmem_limit_bytes=_VMEM_LIMIT_BYTES),
    )(a, b, c, lbl)
    return out[0, 0]


# One fused, jitted total per experiment type: a single pallas_call, a single
# dispatch, mean normalization folded into the kernel.

@jax.jit
def bce_with_logits_total(a, b, c, y):
    return _fused_elementwise_call(_bce_elem, a, b, c, y)


@jax.jit
def l1_total(a, b, c, y):
    return _fused_elementwise_call(_l1_elem, a, b, c, y)


@jax.jit
def cross_entropy_total(a, b, c, labels):
    return _fused_ce_call(a, b, c, labels)


# ------------------------------ CrtLoss port --------------------------------

class CrtLoss:
    """JAX/Pallas port of experiments/models/crtnet.py::CrtLoss."""

    def __init__(self, experiment_type: ExperimentType):
        if experiment_type is ExperimentType.bc:
            self._total_fn = bce_with_logits_total
        elif experiment_type is ExperimentType.mcc:
            self._total_fn = cross_entropy_total
        elif experiment_type is ExperimentType.reg:
            self._total_fn = l1_total
        else:
            raise ValueError(experiment_type)
        self.last_input = None
        self.last_labels = None

    def forward(self, inputs, labels):
        # Forward-pass semantics: store and return self (no compute here).
        self.last_input = inputs
        self.last_labels = labels
        return self

    __call__ = forward

    def total(self):
        # Single fused kernel over all three branches; stays on device.
        return self._total_fn(self.last_input["output_weighted"],
                              self.last_input["output_uncertainty_branch"],
                              self.last_input["output_main_branch"],
                              self.last_labels)

    def item(self):
        # One host sync for the whole summed loss.
        return float(jax.block_until_ready(self.total()))


# --------------------------------- main --------------------------------------

if __name__ == "__main__":
    key = jax.random.PRNGKey(0)
    N, C = 8, 16
    k1, k2, k3, k4, k5, k6 = jax.random.split(key, 6)

    branches = {
        "output_weighted": jax.random.normal(k1, (N, C), jnp.float32),
        "output_uncertainty_branch": jax.random.normal(k2, (N, C), jnp.float32),
        "output_main_branch": jax.random.normal(k3, (N, C), jnp.float32),
    }

    labels_bc = (jax.random.uniform(k4, (N, C)) > 0.5).astype(jnp.float32)
    labels_mcc = jax.random.randint(k5, (N,), 0, C, dtype=jnp.int32)
    labels_reg = jax.random.normal(k4, (N, C), jnp.float32)

    results = {}
    for etype, labels in ((ExperimentType.bc, labels_bc),
                          (ExperimentType.mcc, labels_mcc),
                          (ExperimentType.reg, labels_reg)):
        crt = CrtLoss(etype)
        crt(branches, labels)          # forward: stores state, returns self
        results[etype.name] = crt.item()

    # pure-JAX references
    def ref_bce(x, y):
        return jnp.mean(jnp.maximum(x, 0) - x * y + jnp.log1p(jnp.exp(-jnp.abs(x))))

    def ref_ce(x, lbl):
        return jnp.mean(jax.nn.logsumexp(x, axis=-1) -
                        jnp.take_along_axis(x, lbl[:, None], axis=-1)[:, 0])

    def ref_l1(x, y):
        return jnp.mean(jnp.abs(x - y))

    refs = {
        "bc": float(sum(ref_bce(branches[k], labels_bc) for k in branches)),
        "mcc": float(sum(ref_ce(branches[k], labels_mcc) for k in branches)),
        "reg": float(sum(ref_l1(branches[k], labels_reg) for k in branches)),
    }
    for name in results:
        tol = 1e-3 * max(1.0, abs(refs[name]))
        assert abs(results[name] - refs[name]) < tol, (name, results[name], refs[name])

    # --- stress tests for the multi-tile / masked / parallel-axis paths ------
    kb = jax.random.split(k6, 8)

    # (a) total % 128 == 0, rows > tile -> grid (2, 1), row mask, no HBM pad.
    a1 = [jax.random.normal(kb[i], (4100, 128), jnp.float32) for i in range(3)]
    y1 = (jax.random.uniform(kb[3], (4100, 128)) > 0.5).astype(jnp.float32)
    got = float(jax.block_until_ready(bce_with_logits_total(*a1, y1)))
    want = float(sum(ref_bce(x, y1) for x in a1))
    assert abs(got - want) < 1e-3 * max(1.0, abs(want)), (got, want)

    # (b) ragged total (not % 128) -> element mask + 2-way parallel axis (L1).
    a2 = [jax.random.normal(kb[4 + i], (1000, 1037), jnp.float32) for i in range(3)]
    y2 = jax.random.normal(kb[7], (1000, 1037), jnp.float32)
    got2 = float(jax.block_until_ready(l1_total(*a2, y2)))
    want2 = float(sum(ref_l1(x, y2) for x in a2))
    assert abs(got2 - want2) < 1e-3 * max(1.0, abs(want2)), (got2, want2)

    # (c) CE with multiple row tiles and a partial (masked) last tile.
    kc = jax.random.split(k5, 4)
    ce_big = [jax.random.normal(kc[i], (5000, 16), jnp.float32) for i in range(3)]
    lbl_big = jax.random.randint(kc[3], (5000,), 0, 16, dtype=jnp.int32)
    got_ce = float(jax.block_until_ready(cross_entropy_total(*ce_big, lbl_big)))
    want_ce = float(sum(ref_ce(x, lbl_big) for x in ce_big))
    assert abs(got_ce - want_ce) < 1e-3 * max(1.0, abs(want_ce)), (got_ce, want_ce)

    print("KERNEL_OK")
</pallas_src>

<mosaic_0001>
module attributes {stable_mosaic.version = 11 : i64} {
  func.func @_fused_elementwise_sum_kernel(%arg0: i32, %arg1: i32, %arg2: memref<1x128xf32, #tpu.memory_space<vmem>>, %arg3: memref<1x128xf32, #tpu.memory_space<vmem>>, %arg4: memref<1x128xf32, #tpu.memory_space<vmem>>, %arg5: memref<1x128xf32, #tpu.memory_space<vmem>>, %arg6: memref<8x128xf32, #tpu.memory_space<vmem>>, %arg7: memref<8x128xf32, #tpu.memory_space<vmem>>) attributes {dimension_semantics = [#tpu.dimension_semantics<parallel>, #tpu.dimension_semantics<arbitrary>], iteration_bounds = array<i64: 1, 1>, scalar_prefetch = 0 : i64, scratch_operands = 1 : i64, tpu.core_type = #tpu.core_type<tc>, window_params = [{transform_indices = @transform_0, window_bounds = array<i64: 1, 128>}, {transform_indices = @transform_1, window_bounds = array<i64: 1, 128>}, {transform_indices = @transform_2, window_bounds = array<i64: 1, 128>}, {transform_indices = @transform_3, window_bounds = array<i64: 1, 128>}, {transform_indices = @transform_4, window_bounds = array<i64: 8, 128>}]} {
    %c0_i32 = arith.constant 0 : i32
    %0 = arith.cmpi eq, %arg1, %c0_i32 : i32
    %1 = arith.extui %0 : i1 to i32
    %c0_i32_0 = arith.constant 0 : i32
    %2 = arith.cmpi ne, %1, %c0_i32_0 : i32
    scf.if %2 {
      %cst_22 = arith.constant 0.000000e+00 : f32
      %54 = vector.broadcast %cst_22 : f32 to vector<8x128xf32>
      %c0_23 = arith.constant 0 : index
      %c0_24 = arith.constant 0 : index
      %55 = vector.load %arg7[%c0_23, %c0_24] : memref<8x128xf32, #tpu.memory_space<vmem>>, vector<8x128xf32>
      tpu.vector_store %arg7[%c0_23, %c0_24], %54 {strides = array<i32>} : memref<8x128xf32, #tpu.memory_space<vmem>>, vector<8x128xf32>,
    } else {
    }
    %c0 = arith.constant 0 : index
    %c0_1 = arith.constant 0 : index
    %3 = vector.load %arg5[%c0, %c0_1] : memref<1x128xf32, #tpu.memory_space<vmem>>, vector<1x128xf32>
    %c0_2 = arith.constant 0 : index
    %c0_3 = arith.constant 0 : index
    %4 = vector.load %arg2[%c0_2, %c0_3] : memref<1x128xf32, #tpu.memory_space<vmem>>, vector<1x128xf32>
    %cst = arith.constant 0.000000e+00 : f32
    %5 = vector.broadcast %cst : f32 to vector<1x128xf32>
    %6 = arith.maximumf %4, %5 : vector<1x128xf32>
    %7 = arith.mulf %4, %3 : vector<1x128xf32>
    %8 = arith.subf %6, %7 : vector<1x128xf32>
    %9 = math.absf %4 : vector<1x128xf32>
    %cst_4 = arith.constant 0.000000e+00 : f32
    %10 = vector.broadcast %cst_4 : f32 to vector<1x128xf32>
    %11 = arith.subf %10, %9 : vector<1x128xf32>
    %12 = math.exp %11 : vector<1x128xf32>
    %13 = math.log1p %12 : vector<1x128xf32>
    %14 = arith.addf %8, %13 : vector<1x128xf32>
    %c0_5 = arith.constant 0 : index
    %c0_6 = arith.constant 0 : index
    %15 = vector.load %arg3[%c0_5, %c0_6] : memref<1x128xf32, #tpu.memory_space<vmem>>, vector<1x128xf32>
    %cst_7 = arith.constant 0.000000e+00 : f32
    %16 = vector.broadcast %cst_7 : f32 to vector<1x128xf32>
    %17 = arith.maximumf %15, %16 : vector<1x128xf32>
    %18 = arith.mulf %15, %3 : vector<1x128xf32>
    %19 = arith.subf %17, %18 : vector<1x128xf32>
    %20 = math.absf %15 : vector<1x128xf32>
    %cst_8 = arith.constant 0.000000e+00 : f32
    %21 = vector.broadcast %cst_8 : f32 to vector<1x128xf32>
    %22 = arith.subf %21, %20 : vector<1x128xf32>
    %23 = math.exp %22 : vector<1x128xf32>
    %24 = math.log1p %23 : vector<1x128xf32>
    %25 = arith.addf %19, %24 : vector<1x128xf32>
    %26 = arith.addf %14, %25 : vector<1x128xf32>
    %c0_9 = arith.constant 0 : index
    %c0_10 = arith.constant 0 : index
    %27 = vector.load %arg4[%c0_9, %c0_10] : memref<1x128xf32, #tpu.memory_space<vmem>>, vector<1x128xf32>
    %cst_11 = arith.constant 0.000000e+00 : f32
    %28 = vector.broadcast %cst_11 : f32 to vector<1x128xf32>
    %29 = arith.maximumf %27, %28 : vector<1x128xf32>
    %30 = arith.mulf %27, %3 : vector<1x128xf32>
    %31 = arith.subf %29, %30 : vector<1x128xf32>
    %32 = math.absf %27 : vector<1x128xf32>
    %cst_12 = arith.constant 0.000000e+00 : f32
    %33 = vector.broadcast %cst_12 : f32 to vector<1x128xf32>
    %34 = arith.subf %33, %32 : vector<1x128xf32>
    %35 = math.exp %34 : vector<1x128xf32>
    %36 = math.log1p %35 : vector<1x128xf32>
    %37 = arith.addf %31, %36 : vector<1x128xf32>
    %38 = arith.addf %26, %37 : vector<1x128xf32>
    %39 = tpu.iota {dimensions = array<i32: 0>} : vector<8x128xi32>
    %c0_i32_13 = arith.constant 0 : i32
    %40 = vector.broadcast %c0_i32_13 : i32 to vector<8x128xi32>
    %41 = arith.cmpi eq, %39, %40 : vector<8x128xi32>
    %cst_14 = arith.constant dense<0.000000e+00> : vector<128xf32>
    %42 = vector.multi_reduction <add>, %38, %cst_14 [0] : vector<1x128xf32> to vector<128xf32>
    %43 = vector.shape_cast %42 : vector<128xf32> to vector<1x128xf32>
    %cst_15 = arith.constant 0.000000e+00 : f32
    %44 = vector.shape_cast %43 : vector<1x128xf32> to vector<1x128xf32>
    %45 = vector.broadcast %44 : vector<1x128xf32> to vector<8x128xf32>
    %46 = vector.broadcast %cst_15 : f32 to vector<8x128xf32>
    %47 = arith.select %41, %45, %46 : vector<8x128xi1>, vector<8x128xf32>
    %c0_16 = arith.constant 0 : index
    %c0_17 = arith.constant 0 : index
    %48 = vector.load %arg7[%c0_16, %c0_17] : memref<8x128xf32, #tpu.memory_space<vmem>>, vector<8x128xf32>
    %49 = arith.addf %48, %47 : vector<8x128xf32>
    %c0_18 = arith.constant 0 : index
    %c0_19 = arith.constant 0 : index
    %50 = vector.load %arg7[%c0_18, %c0_19] : memref<8x128xf32, #tpu.memory_space<vmem>>, vector<8x128xf32>
    tpu.vector_store %arg7[%c0_18, %c0_19], %49 {strides = array<i32>} : memref<8x128xf32, #tpu.memory_space<vmem>>, vector<8x128xf32>,
    %c0_i32_20 = arith.constant 0 : i32
    %51 = arith.cmpi eq, %arg1, %c0_i32_20 : i32
    %52 = arith.extui %51 : i1 to i32
    %c0_i32_21 = arith.constant 0 : i32
    %53 = arith.cmpi ne, %52, %c0_i32_21 : i32
    scf.if %53 {
      %c0_22 = arith.constant 0 : index
      %c0_23 = arith.constant 0 : index
      %54 = vector.load %arg7[%c0_22, %c0_23] : memref<8x128xf32, #tpu.memory_space<vmem>>, vector<8x128xf32>
      %cst_24 = arith.constant 7.812500e-03 : f32
      %55 = vector.broadcast %cst_24 : f32 to vector<8x128xf32>
      %56 = arith.mulf %54, %55 : vector<8x128xf32>
      %c0_25 = arith.constant 0 : index
      %c0_26 = arith.constant 0 : index
      %57 = vector.load %arg6[%c0_25, %c0_26] : memref<8x128xf32, #tpu.memory_space<vmem>>, vector<8x128xf32>
      tpu.vector_store %arg6[%c0_25, %c0_26], %56 {strides = array<i32>} : memref<8x128xf32, #tpu.memory_space<vmem>>, vector<8x128xf32>,
    } else {
    }
    return
  }
  func.func @transform_0(%arg0: i32, %arg1: i32) -> (i32, i32) {
    %c1_i32 = arith.constant 1 : i32
    %0 = arith.muli %arg0, %c1_i32 : i32
    %1 = arith.addi %0, %arg1 : i32
    %c0_i32 = arith.constant 0 : i32
    %c0_i32_0 = arith.constant 0 : i32
    return %1, %c0_i32 : i32, i32
  }
  func.func @transform_1(%arg0: i32, %arg1: i32) -> (i32, i32) {
    %c1_i32 = arith.constant 1 : i32
    %0 = arith.muli %arg0, %c1_i32 : i32
    %1 = arith.addi %0, %arg1 : i32
    %c0_i32 = arith.constant 0 : i32
    %c0_i32_0 = arith.constant 0 : i32
    return %1, %c0_i32 : i32, i32
  }
  func.func @transform_2(%arg0: i32, %arg1: i32) -> (i32, i32) {
    %c1_i32 = arith.constant 1 : i32
    %0 = arith.muli %arg0, %c1_i32 : i32
    %1 = arith.addi %0, %arg1 : i32
    %c0_i32 = arith.constant 0 : i32
    %c0_i32_0 = arith.constant 0 : i32
    return %1, %c0_i32 : i32, i32
  }
  func.func @transform_3(%arg0: i32, %arg1: i32) -> (i32, i32) {
    %c1_i32 = arith.constant 1 : i32
    %0 = arith.muli %arg0, %c1_i32 : i32
    %1 = arith.addi %0, %arg1 : i32
    %c0_i32 = arith.constant 0 : i32
    %c0_i32_0 = arith.constant 0 : i32
    return %1, %c0_i32 : i32, i32
  }
  func.func @transform_4(%arg0: i32, %arg1: i32) -> (i32, i32) {
    %c0_i32 = arith.constant 0 : i32
    %c0_i32_0 = arith.constant 0 : i32
    return %arg0, %c0_i32 : i32, i32
  }
}

</mosaic_0001>

<llo_original>
// kernel: bce_with_logits_total.1
$region0: #{bce_with_logits_total.1}
  #allocation0 [shape = 'u32[]', space=smem, size = 0x4, offset = 0x4, fixed_abs, tag = 'smem constant byte address 0x4 - core index']
  #allocation1 [shape = 'u32[72,128]{1,0:T(1,128)}', space=vmem, size = 0x9000, scoped, tag = 'internal scratch']
  #allocation2 [shape = 'f32[8,128]{1,0:T(8,128)}', space=vmem, size = 0x1000, scoped, tag = 'scratch operand']
  %s0 = inlined_call_operand.vmem [shape: f32[1,128], index: 0, kind: input, shape index: {}]
  %s1 = inlined_call_operand.vmem [shape: f32[1,128], index: 1, kind: input, shape index: {}]
  %s2 = inlined_call_operand.vmem [shape: f32[1,128], index: 2, kind: input, shape index: {}]
  %s3 = inlined_call_operand.vmem [shape: f32[1,128], index: 3, kind: input, shape index: {}]
  %s4 = inlined_call_operand.vmem [shape: f32[8,128], index: 4, kind: output, shape index: {}]
  %s5 = sld [smem:[#allocation0]]
  $region34: #{bce_with_logits_total.1} parent=0
    _
  %s7 = ssub.s32 1, %s5
  %s8 = scalar_select 0, %s7, %s5
  // Predicated region
  $region2: #{bce_with_logits_total.1} parent=0 // pred_check
    _
  $region3: #{bce_with_logits_total.1} parent=0 // pred_check_branch
    %10 = sbr.rel (0) target = $region5
  $region4: #{bce_with_logits_total.1} parent=0 // pred_region
    %s11 = sadd.s32 0, 0
    %p12 = scmp.lt.s32.totalorder %s11, 0
    %s13 = scalar_select %p12, %s11, 0
    %s14 = scalar_lea.vmem %s0, %s13
    %s15 = sadd.s32 0, 0
  $region5: #{bce_with_logits_total.1} parent=0 // pred_fallthru
    _
  // Predicated region
  $region6: #{bce_with_logits_total.1} parent=0 // pred_check
    _
  $region7: #{bce_with_logits_total.1} parent=0 // pred_check_branch
    %17 = sbr.rel (0) target = $region9
  $region8: #{bce_with_logits_total.1} parent=0 // pred_region
    %s18 = sadd.s32 0, 0
    %p19 = scmp.lt.s32.totalorder %s18, 0
    %s20 = scalar_select %p19, %s18, 0
    %s21 = scalar_lea.vmem %s1, %s20
    %s22 = sadd.s32 0, 0
  $region9: #{bce_with_logits_total.1} parent=0 // pred_fallthru
    _
  // Predicated region
  $region10: #{bce_with_logits_total.1} parent=0 // pred_check
    _
  $region11: #{bce_with_logits_total.1} parent=0 // pred_check_branch
    %24 = sbr.rel (0) target = $region13
  $region12: #{bce_with_logits_total.1} parent=0 // pred_region
    %s25 = sadd.s32 0, 0
    %p26 = scmp.lt.s32.totalorder %s25, 0
    %s27 = scalar_select %p26, %s25, 0
    %s28 = scalar_lea.vmem %s2, %s27
    %s29 = sadd.s32 0, 0
  $region13: #{bce_with_logits_total.1} parent=0 // pred_fallthru
    _
  // Predicated region
  $region14: #{bce_with_logits_total.1} parent=0 // pred_check
    _
  $region15: #{bce_with_logits_total.1} parent=0 // pred_check_branch
    %31 = sbr.rel (0) target = $region17
  $region16: #{bce_with_logits_total.1} parent=0 // pred_region
    %s32 = sadd.s32 0, 0
    %p33 = scmp.lt.s32.totalorder %s32, 0
    %s34 = scalar_select %p33, %s32, 0
    %s35 = scalar_lea.vmem %s3, %s34
    %s36 = sadd.s32 0, 0
  $region17: #{bce_with_logits_total.1} parent=0 // pred_fallthru
    _
  %s37 = sadd.s32 0, 0
  %p38 = scmp.lt.s32.totalorder %s37, 0
  %s39 = scalar_select %p38, %s37, 0
  %s40 = scalar_lea.vmem %s0, %s39
  %s41 = sadd.s32 0, 0
  %p42 = scmp.lt.s32.totalorder %s41, 0
  %s43 = scalar_select %p42, %s41, 0
  %s44 = scalar_lea.vmem %s1, %s43
  %s45 = sadd.s32 0, 0
  %p46 = scmp.lt.s32.totalorder %s45, 0
  %s47 = scalar_select %p46, %s45, 0
  %s48 = scalar_lea.vmem %s2, %s47
  %s49 = sadd.s32 0, 0
  %p50 = scmp.lt.s32.totalorder %s49, 0
  %s51 = scalar_select %p50, %s49, 0
  %s52 = scalar_lea.vmem %s3, %s51
  %s53 = sadd.s32 0, 0
  %p54 = scmp.lt.s32.totalorder %s53, 0
  %s55 = scalar_select %p54, %s53, 0
  %s56 = scalar_lea.vmem %s0, %s55
  %s57 = sadd.s32 0, 0
  %s58 = sadd.s32 0, 0
  %p59 = scmp.lt.s32.totalorder %s58, 0
  %s60 = scalar_select %p59, %s58, 0
  %s61 = scalar_lea.vmem %s1, %s60
  %s62 = sadd.s32 0, 0
  %s63 = sadd.s32 0, 0
  %p64 = scmp.lt.s32.totalorder %s63, 0
  %s65 = scalar_select %p64, %s63, 0
  %s66 = scalar_lea.vmem %s2, %s65
  %s67 = sadd.s32 0, 0
  %s68 = sadd.s32 0, 0
  %p69 = scmp.lt.s32.totalorder %s68, 0
  %s70 = scalar_select %p69, %s68, 0
  %s71 = scalar_lea.vmem %s3, %s70
  %s72 = sadd.s32 0, 0
  %p73 = scmp.eq.s32.totalorder 0, 0
  // Predicated region
  $region18: #{bce_with_logits_total.1} parent=0 // pred_check
    %p74 = pneg %p73
  $region19: #{bce_with_logits_total.1} parent=0 // pred_check_branch
    %76 = sbr.rel (%p74) target = $region21
  $region20: #{bce_with_logits_total.1} parent=0 // pred_region
    %77 = vst [vmem:[#allocation2] sm:$0xff] 0.0
  $region21: #{bce_with_logits_total.1} parent=0 // pred_fallthru
    _
  %v78 = vld [vmem:[%s71] sm:$0x1]
  %v79 = vld [vmem:[%s56] sm:$0x1]
  %v80 = vmax.f32 %v79, 0.0
  %v81 = vmul.f32 %v79, %v78
  %v82 = vsub.f32 %v80, %v81
  %v83 = vand.u32 2147483647, %v79
  %v84 = vsub.f32 0.0, %v83
  %v85 = vmul.f32 %v84, 1.442695
  %v86 = vpow.pop %v85
  %v87 = vadd.f32 %v86, 1.0
  %v88 = vlog2.pop %v87
  %v89 = vmul.f32 %v88, 0.6931472
  %v90 = vmul.f32 -0.5, %v86
  %v91 = vadd.f32 %v90, 1.0
  %v92 = vmul.f32 %v91, %v86
  %v93 = vand.u32 2147483647, %v86
  %vm94 = vcmp.lt.f32.partialorder %v93, 0.0004427343
  %v95 = vsel %vm94, %v92, %v89
  %v96 = vadd.f32 %v82, %v95
  %v97 = vld [vmem:[%s61] sm:$0x1]
  %v98 = vmax.f32 %v97, 0.0
  %v99 = vmul.f32 %v97, %v78
  %v100 = vsub.f32 %v98, %v99
  %v101 = vand.u32 2147483647, %v97
  %v102 = vsub.f32 0.0, %v101
  %v103 = vmul.f32 %v102, 1.442695
  %v104 = vpow.pop %v103
  %v105 = vadd.f32 %v104, 1.0
  %v106 = vlog2.pop %v105
  %v107 = vmul.f32 %v106, 0.6931472
  %v108 = vmul.f32 -0.5, %v104
  %v109 = vadd.f32 %v108, 1.0
  %v110 = vmul.f32 %v109, %v104
  %v111 = vand.u32 2147483647, %v104
  %vm112 = vcmp.lt.f32.partialorder %v111, 0.0004427343
  %v113 = vsel %vm112, %v110, %v107
  %v114 = vadd.f32 %v100, %v113
  %v115 = vadd.f32 %v96, %v114
  %v116 = vld [vmem:[%s66] sm:$0x1]
  %v117 = vmax.f32 %v116, 0.0
  %v118 = vmul.f32 %v116, %v78
  %v119 = vsub.f32 %v117, %v118
  %v120 = vand.u32 2147483647, %v116
  %v121 = vsub.f32 0.0, %v120
  %v122 = vmul.f32 %v121, 1.442695
  %v123 = vpow.pop %v122
  %v124 = vadd.f32 %v123, 1.0
  %v125 = vlog2.pop %v124
  %v126 = vmul.f32 %v125, 0.6931472
  %v127 = vmul.f32 -0.5, %v123
  %v128 = vadd.f32 %v127, 1.0
  %v129 = vmul.f32 %v128, %v123
  %v130 = vand.u32 2147483647, %v123
  %vm131 = vcmp.lt.f32.partialorder %v130, 0.0004427343
  %v132 = vsel %vm131, %v129, %v126
  %v133 = vadd.f32 %v119, %v132
  %v134 = vadd.f32 %v115, %v133
  %v135 = vlaneseq
  %v136 = vshrl.u32 %v135, 7
  %vm137 = vcmp.eq.s32.totalorder %v136, 0
  %v138 = vadd.f32 %v134, 0.0
  %v140 = vperm.slane %v138, 0
  %v142 = vsel %vm137, %v140, 0.0
  %v143 = vld [vmem:[#allocation2] sm:$0xff]
  %v144 = vadd.f32 %v143, %v142
  %145 = vst [vmem:[#allocation2] sm:$0xff] %v144
  // Predicated region
  $region22: #{bce_with_logits_total.1} parent=0 // pred_check
    %p146 = pneg %p73
  $region23: #{bce_with_logits_total.1} parent=0 // pred_check_branch
    %148 = sbr.rel (%p146) target = $region25
  $region24: #{bce_with_logits_total.1} parent=0 // pred_region
    %v149 = vld [vmem:[#allocation2] sm:$0xff]
    %v150 = vmul.f32 %v149, 0.0078125
    %151 = vst [vmem:[%s4] sm:$0xff] %v150
  $region25: #{bce_with_logits_total.1} parent=0 // pred_fallthru
    _
  // Predicated region
  $region26: #{bce_with_logits_total.1} parent=0 // pred_check
    _
  $region27: #{bce_with_logits_total.1} parent=0 // pred_check_branch
    %153 = sbr.rel (0) target = $region29
  $region28: #{bce_with_logits_total.1} parent=0 // pred_region
    _
  $region29: #{bce_with_logits_total.1} parent=0 // pred_fallthru
    _
  // Predicated region
  $region30: #{bce_with_logits_total.1} parent=0 // pred_check
    _
  $region31: #{bce_with_logits_total.1} parent=0 // pred_check_branch
    %155 = sbr.rel (0) target = $region33
  $region32: #{bce_with_logits_total.1} parent=0 // pred_region
    _
  $region33: #{bce_with_logits_total.1} parent=0 // pred_fallthru
    _

</llo_original>
